<compile_context>
chip_gen: v7x
topology: tpu7x:2x2x1
jax: 0.10.0
libtpu: 0.0.40
codegen_flags: <defaults>
</compile_context>

<pallas_src>
import functools

import jax
import jax.numpy as jnp
import numpy as np
from jax.experimental import pallas as pl
from jax.experimental.pallas import tpu as pltpu


def _round_up(x, m):
    return ((x + m - 1) // m) * m


def _cdiv(a, b):
    return -(-a // b)


# ----------------------------------------------------------------------------
# Pallas kernel: backbone (2x Linear+ReLU) + fused head matmul + mu epilogue
# ----------------------------------------------------------------------------
def _decoder_kernel(x_ref, w1_ref, b1_ref, w2_ref, b2_ref, wh_ref, bh_ref,
                    o_ref, *, kp_activation, max_delta):
    # x arrives at its natural width in f32; cast to bf16 on the VPU so no
    # padded input ever hits HBM.  Matmuls are bf16 on the MXU, f32 accumulate.
    x = x_ref[...].astype(jnp.bfloat16)                               # (tm, K)
    h = jnp.dot(x, w1_ref[...], preferred_element_type=jnp.float32) + b1_ref[...]
    h = jnp.maximum(h, 0.0).astype(jnp.bfloat16)                      # ReLU in f32
    h = jnp.dot(h, w2_ref[...], preferred_element_type=jnp.float32) + b2_ref[...]
    h = jnp.maximum(h, 0.0).astype(jnp.bfloat16)
    # All seven heads fused into one lane-dense (H_pad, 128) matmul.
    o = jnp.dot(h, wh_ref[...], preferred_element_type=jnp.float32) + bh_ref[...]

    # Fused keypoint epilogue: mu_x / mu_y occupy columns 0..1 of the fused
    # head output (reordered at init), so the predicate is one compare.
    col = jax.lax.broadcasted_iota(jnp.int32, o.shape, 1)
    is_mu = col < 2
    if kp_activation == "tanh":
        act = jnp.tanh(o)
    elif kp_activation == "sigmoid":
        act = jax.nn.sigmoid(o)
    else:
        act = o
    # torch reference applies the max_delta scale unconditionally.
    o = jnp.where(is_mu, max_delta * act, o)

    o_ref[...] = o.astype(o_ref.dtype)


def _run_decoder_core(x2d, w1, b1, w2, b2, wh, bh, *,
                      tile_m, kp_activation, max_delta):
    n_rows, k = x2d.shape              # n_rows is already a multiple of tile_m
    h_pad = w1.shape[1]
    d_pad = wh.shape[1]
    grid = (n_rows // tile_m,)

    kernel = functools.partial(
        _decoder_kernel, kp_activation=kp_activation, max_delta=max_delta)

    flops = 2 * n_rows * (k * h_pad + h_pad * h_pad + h_pad * d_pad)
    transcendentals = n_rows * d_pad if kp_activation in ("tanh", "sigmoid") else 0
    bytes_accessed = (n_rows * k * x2d.dtype.itemsize          # input (f32)
                      + n_rows * d_pad * 2                     # output (bf16)
                      + (w1.size + w2.size + wh.size) * 2      # bf16 weights
                      + (b1.size + b2.size + bh.size) * 4)     # f32 biases

    return pl.pallas_call(
        kernel,
        out_shape=jax.ShapeDtypeStruct((n_rows, d_pad), jnp.bfloat16),
        grid_spec=pltpu.PrefetchScalarGridSpec(
            num_scalar_prefetch=0,
            grid=grid,
            in_specs=[
                pl.BlockSpec((tile_m, k),     lambda i: (i, 0)),  # x tile (f32, natural K)
                pl.BlockSpec((k, h_pad),      lambda i: (0, 0)),  # W1  (bf16)
                pl.BlockSpec((1, h_pad),      lambda i: (0, 0)),  # b1  (f32)
                pl.BlockSpec((h_pad, h_pad),  lambda i: (0, 0)),  # W2  (bf16)
                pl.BlockSpec((1, h_pad),      lambda i: (0, 0)),  # b2  (f32)
                pl.BlockSpec((h_pad, d_pad),  lambda i: (0, 0)),  # W_heads (bf16)
                pl.BlockSpec((1, d_pad),      lambda i: (0, 0)),  # b_heads (f32)
            ],
            out_specs=pl.BlockSpec((tile_m, d_pad), lambda i: (i, 0)),
        ),
        compiler_params=pltpu.CompilerParams(
            dimension_semantics=("parallel",),   # row axis shards across TCs
        ),
        cost_estimate=pl.CostEstimate(
            flops=int(flops),
            transcendentals=int(transcendentals),
            bytes_accessed=int(bytes_accessed)),
    )(x2d, w1, b1, w2, b2, wh, bh)


# ----------------------------------------------------------------------------
# Module wrapper
# ----------------------------------------------------------------------------
class ParticleFeatureDecoderPallas:
    LANE = 128          # lane width: hidden / fused-head output padded to this
    MAX_TILE_M = 2048   # row tile upper bound (a few MiB of VMEM on all gens)

    def __init__(self, input_dim, features_dim, bg_features_dim, hidden_dim,
                 kp_activation="tanh", max_delta=1.0, delta_features=False,
                 key=jax.random.PRNGKey(0)):
        self.input_dim = input_dim
        self.features_dim = features_dim
        self.bg_features_dim = bg_features_dim
        self.hidden_dim = hidden_dim
        self.kp_activation = kp_activation
        self.max_delta = max_delta
        self.delta_features = delta_features

        self.d_out = 12 + 2 * features_dim + 2 * bg_features_dim
        self.h_pad = _round_up(hidden_dim, self.LANE)
        self.d_pad = _round_up(self.d_out, self.LANE)

        # Deterministic synthetic parameter init (shapes match the torch module).
        def linear(k, fan_in, fan_out):
            kw, kb = jax.random.split(k)
            scale = 1.0 / jnp.sqrt(fan_in)
            w = jax.random.uniform(kw, (fan_in, fan_out), jnp.float32, -scale, scale)
            b = jax.random.uniform(kb, (1, fan_out), jnp.float32, -scale, scale)
            return w, b

        keys = jax.random.split(key, 9)
        self.w1_f32, self.b1_f32 = linear(keys[0], input_dim, hidden_dim)
        self.w2_f32, self.b2_f32 = linear(keys[1], hidden_dim, hidden_dim)
        wx, bx = linear(keys[2], hidden_dim, 2)                 # x_head
        wy, by = linear(keys[3], hidden_dim, 2)                 # y_head
        ws, bsx = linear(keys[4], hidden_dim, 4)                # scale_xy_head
        wo, bo = linear(keys[5], hidden_dim, 2)                 # obj_on_head
        wd, bd = linear(keys[6], hidden_dim, 2)                 # depth_head
        wf, bf = linear(keys[7], hidden_dim, 2 * features_dim)  # features_head
        wb, bb = linear(keys[8], hidden_dim, 2 * bg_features_dim)  # bg_features_head

        # Fused-head column layout: [mu_x, mu_y, logvar_x, logvar_y,
        #   mu_scale(2), logvar_scale(2), obj_on(2), depth(2),
        #   features(2*fd), bg_features(2*bfd)].
        # mu columns first -> in-kernel predicate `col < 2`, contiguous wrapper slices.
        self.wh_f32 = jnp.concatenate(
            [wx[:, 0:1], wy[:, 0:1], wx[:, 1:2], wy[:, 1:2], ws, wo, wd, wf, wb],
            axis=1)
        self.bh_f32 = jnp.concatenate(
            [bx[:, 0:1], by[:, 0:1], bx[:, 1:2], by[:, 1:2], bsx, bo, bd, bf, bb],
            axis=1)

        def pad2(a, r, c, dtype):
            return jnp.pad(a, ((0, r - a.shape[0]), (0, c - a.shape[1]))).astype(dtype)

        # Weights lane-padded on hidden/output dims only (K stays natural);
        # matmul weights bf16, biases f32.
        self.w1 = pad2(self.w1_f32, input_dim, self.h_pad, jnp.bfloat16)
        self.b1 = pad2(self.b1_f32, 1, self.h_pad, jnp.float32)
        self.w2 = pad2(self.w2_f32, self.h_pad, self.h_pad, jnp.bfloat16)
        self.b2 = pad2(self.b2_f32, 1, self.h_pad, jnp.float32)
        self.wh = pad2(self.wh_f32, self.h_pad, self.d_pad, jnp.bfloat16)
        self.bh = pad2(self.bh_f32, 1, self.d_pad, jnp.float32)

    def __call__(self, x):
        bs, n_particles, in_dim = x.shape
        assert in_dim == self.input_dim
        fd, bfd = self.features_dim, self.bg_features_dim

        n_rows = bs * n_particles
        # Balanced row tiles: padding waste bounded to <16 rows per tile; force
        # >=2 grid steps once rows are non-trivial so v7x's two TensorCores
        # both get work and I/O stays double-buffered.
        num_tiles = max(1, _cdiv(n_rows, self.MAX_TILE_M))
        if num_tiles == 1 and n_rows > 32:
            num_tiles = 2
        tile_m = _round_up(_cdiv(n_rows, num_tiles), 16)
        rows_pad = num_tiles * tile_m

        # No lane padding / dtype cast here: the kernel reads natural-width f32
        # rows and casts on the VPU.  Only cheap row padding (if any) remains.
        x2d = x.reshape(n_rows, in_dim)
        if rows_pad != n_rows:
            x2d = jnp.pad(x2d, ((0, rows_pad - n_rows), (0, 0)))

        out2d = _run_decoder_core(
            x2d, self.w1, self.b1, self.w2, self.b2, self.wh, self.bh,
            tile_m=tile_m, kp_activation=self.kp_activation,
            max_delta=float(self.max_delta))

        # Drop padded rows/cols BEFORE the fg/bg split so "background = last
        # particle" indexing stays correct; cast back to f32 to match torch.
        out = out2d[:n_rows, :self.d_out].astype(jnp.float32)
        out = out.reshape(bs, n_particles, self.d_out)

        fg = out[:, : n_particles - 1, :]          # foreground particles
        bg = out[:, n_particles - 1, :]            # background particle (squeezed)

        o_f = 12
        o_bg = o_f + 2 * fd

        # mu already has activation + max_delta applied in-kernel.
        mu = fg[..., 0:2]
        logvar = fg[..., 2:4]
        mu_scale = fg[..., 4:6]
        logvar_scale = fg[..., 6:8]
        obj_on = fg[..., 8:10]
        lobj_on_a = fg[..., 8:9]
        lobj_on_b = fg[..., 9:10]
        mu_depth = fg[..., 10:11]
        logvar_depth = fg[..., 11:12]
        mu_features = fg[..., o_f:o_f + fd]
        logvar_features = fg[..., o_f + fd:o_f + 2 * fd]
        mu_bg_features = bg[..., o_bg:o_bg + bfd]
        logvar_bg_features = bg[..., o_bg + bfd:o_bg + 2 * bfd]

        return {
            "mu": mu, "logvar": logvar,
            "lobj_on_a": lobj_on_a, "lobj_on_b": lobj_on_b, "obj_on": obj_on,
            "mu_depth": mu_depth, "logvar_depth": logvar_depth,
            "mu_scale": mu_scale, "logvar_scale": logvar_scale,
            "mu_features": mu_features, "logvar_features": logvar_features,
            "mu_bg_features": mu_bg_features, "logvar_bg_features": logvar_bg_features,
        }


if __name__ == "__main__":
    bs, n_particles, input_dim = 2, 8, 16
    hidden_dim, features_dim, bg_features_dim = 32, 8, 8

    key = jax.random.PRNGKey(0)
    k_param, k_x = jax.random.split(key)
    x = jax.random.normal(k_x, (bs, n_particles, input_dim), dtype=jnp.float32)

    decoder = ParticleFeatureDecoderPallas(
        input_dim, features_dim, bg_features_dim, hidden_dim, key=k_param)

    out = decoder(x)
    jax.block_until_ready(out)

    # shape sanity checks
    assert out["mu"].shape == (bs, n_particles - 1, 2)
    assert out["logvar"].shape == (bs, n_particles - 1, 2)
    assert out["mu_scale"].shape == (bs, n_particles - 1, 2)
    assert out["logvar_scale"].shape == (bs, n_particles - 1, 2)
    assert out["obj_on"].shape == (bs, n_particles - 1, 2)
    assert out["mu_depth"].shape == (bs, n_particles - 1, 1)
    assert out["mu_features"].shape == (bs, n_particles - 1, features_dim)
    assert out["mu_bg_features"].shape == (bs, bg_features_dim)
    assert out["logvar_bg_features"].shape == (bs, bg_features_dim)

    # numerical check against a pure-JAX f32 reference
    # (loose tol: bf16 matmuls + bf16 output store)
    h = jnp.maximum(x @ decoder.w1_f32 + decoder.b1_f32, 0.0)
    h = jnp.maximum(h @ decoder.w2_f32 + decoder.b2_f32, 0.0)
    o_ref = h @ decoder.wh_f32 + decoder.bh_f32
    fg_ref, bg_ref = o_ref[:, :-1, :], o_ref[:, -1, :]
    ref_mu = decoder.max_delta * jnp.tanh(fg_ref[..., 0:2])
    ref_logvar = fg_ref[..., 2:4]
    ref_obj_on = fg_ref[..., 8:10]
    o_bg_off = 12 + 2 * features_dim
    ref_mu_bg = bg_ref[..., o_bg_off:o_bg_off + bg_features_dim]

    np.testing.assert_allclose(np.asarray(out["mu"]), np.asarray(ref_mu),
                               atol=5e-2, rtol=5e-2)
    np.testing.assert_allclose(np.asarray(out["logvar"]), np.asarray(ref_logvar),
                               atol=5e-2, rtol=5e-2)
    np.testing.assert_allclose(np.asarray(out["obj_on"]), np.asarray(ref_obj_on),
                               atol=5e-2, rtol=5e-2)
    np.testing.assert_allclose(np.asarray(out["mu_bg_features"]),
                               np.asarray(ref_mu_bg), atol=5e-2, rtol=5e-2)

    print("KERNEL_OK")
</pallas_src>

<mosaic_0001>
module attributes {stable_mosaic.version = 11 : i64} {
  func.func @_decoder_kernel(%arg0: i32, %arg1: memref<16x16xf32, #tpu.memory_space<vmem>>, %arg2: memref<16x128xbf16, #tpu.memory_space<vmem>>, %arg3: memref<1x128xf32, #tpu.memory_space<vmem>>, %arg4: memref<128x128xbf16, #tpu.memory_space<vmem>>, %arg5: memref<1x128xf32, #tpu.memory_space<vmem>>, %arg6: memref<128x128xbf16, #tpu.memory_space<vmem>>, %arg7: memref<1x128xf32, #tpu.memory_space<vmem>>, %arg8: memref<16x128xbf16, #tpu.memory_space<vmem>>) attributes {dimension_semantics = [#tpu.dimension_semantics<parallel>], iteration_bounds = array<i64: 1>, scalar_prefetch = 0 : i64, scratch_operands = 0 : i64, tpu.core_type = #tpu.core_type<tc>, window_params = [{transform_indices = @transform_0, window_bounds = array<i64: 16, 16>}, {pipeline_mode = #tpu.pipeline_mode<synchronous>, transform_indices = @transform_1, window_bounds = array<i64: 16, 128>}, {pipeline_mode = #tpu.pipeline_mode<synchronous>, transform_indices = @transform_2, window_bounds = array<i64: 1, 128>}, {pipeline_mode = #tpu.pipeline_mode<synchronous>, transform_indices = @transform_3, window_bounds = array<i64: 128, 128>}, {pipeline_mode = #tpu.pipeline_mode<synchronous>, transform_indices = @transform_4, window_bounds = array<i64: 1, 128>}, {pipeline_mode = #tpu.pipeline_mode<synchronous>, transform_indices = @transform_5, window_bounds = array<i64: 128, 128>}, {pipeline_mode = #tpu.pipeline_mode<synchronous>, transform_indices = @transform_6, window_bounds = array<i64: 1, 128>}, {transform_indices = @transform_7, window_bounds = array<i64: 16, 128>}]} {
    %c0 = arith.constant 0 : index
    %c0_0 = arith.constant 0 : index
    %0 = vector.load %arg1[%c0, %c0_0] : memref<16x16xf32, #tpu.memory_space<vmem>>, vector<16x16xf32>
    %1 = arith.truncf %0 : vector<16x16xf32> to vector<16x16xbf16>
    %c0_1 = arith.constant 0 : index
    %c0_2 = arith.constant 0 : index
    %2 = vector.load %arg2[%c0_1, %c0_2] : memref<16x128xbf16, #tpu.memory_space<vmem>>, vector<16x128xbf16>
    %cst = arith.constant dense<0.000000e+00> : vector<16x128xf32>
    %3 = tpu.matmul %1, %2, %cst {dimension_numbers = #tpu.dot_dimension_numbers<[1], [0], [0], [1], [0, 0, 1, 1], [], []>} : vector<16x16xbf16>, vector<16x128xbf16>, vector<16x128xf32> -> vector<16x128xf32>
    %c0_3 = arith.constant 0 : index
    %c0_4 = arith.constant 0 : index
    %4 = vector.load %arg3[%c0_3, %c0_4] : memref<1x128xf32, #tpu.memory_space<vmem>>, vector<1x128xf32>
    %5 = vector.broadcast %4 : vector<1x128xf32> to vector<16x128xf32>
    %6 = arith.addf %3, %5 : vector<16x128xf32>
    %cst_5 = arith.constant 0.000000e+00 : f32
    %7 = vector.broadcast %cst_5 : f32 to vector<16x128xf32>
    %8 = arith.maximumf %6, %7 : vector<16x128xf32>
    %9 = arith.truncf %8 : vector<16x128xf32> to vector<16x128xbf16>
    %c0_6 = arith.constant 0 : index
    %c0_7 = arith.constant 0 : index
    %10 = vector.load %arg4[%c0_6, %c0_7] : memref<128x128xbf16, #tpu.memory_space<vmem>>, vector<128x128xbf16>
    %cst_8 = arith.constant dense<0.000000e+00> : vector<16x128xf32>
    %11 = tpu.matmul %9, %10, %cst_8 {dimension_numbers = #tpu.dot_dimension_numbers<[1], [0], [0], [1], [0, 0, 1, 1], [], []>} : vector<16x128xbf16>, vector<128x128xbf16>, vector<16x128xf32> -> vector<16x128xf32>
    %c0_9 = arith.constant 0 : index
    %c0_10 = arith.constant 0 : index
    %12 = vector.load %arg5[%c0_9, %c0_10] : memref<1x128xf32, #tpu.memory_space<vmem>>, vector<1x128xf32>
    %13 = vector.broadcast %12 : vector<1x128xf32> to vector<16x128xf32>
    %14 = arith.addf %11, %13 : vector<16x128xf32>
    %cst_11 = arith.constant 0.000000e+00 : f32
    %15 = vector.broadcast %cst_11 : f32 to vector<16x128xf32>
    %16 = arith.maximumf %14, %15 : vector<16x128xf32>
    %17 = arith.truncf %16 : vector<16x128xf32> to vector<16x128xbf16>
    %c0_12 = arith.constant 0 : index
    %c0_13 = arith.constant 0 : index
    %18 = vector.load %arg6[%c0_12, %c0_13] : memref<128x128xbf16, #tpu.memory_space<vmem>>, vector<128x128xbf16>
    %cst_14 = arith.constant dense<0.000000e+00> : vector<16x128xf32>
    %19 = tpu.matmul %17, %18, %cst_14 {dimension_numbers = #tpu.dot_dimension_numbers<[1], [0], [0], [1], [0, 0, 1, 1], [], []>} : vector<16x128xbf16>, vector<128x128xbf16>, vector<16x128xf32> -> vector<16x128xf32>
    %c0_15 = arith.constant 0 : index
    %c0_16 = arith.constant 0 : index
    %20 = vector.load %arg7[%c0_15, %c0_16] : memref<1x128xf32, #tpu.memory_space<vmem>>, vector<1x128xf32>
    %21 = vector.broadcast %20 : vector<1x128xf32> to vector<16x128xf32>
    %22 = arith.addf %19, %21 : vector<16x128xf32>
    %23 = tpu.iota {dimensions = array<i32: 1>} : vector<16x128xi32>
    %c2_i32 = arith.constant 2 : i32
    %24 = vector.broadcast %c2_i32 : i32 to vector<16x128xi32>
    %25 = arith.cmpi slt, %23, %24 : vector<16x128xi32>
    %26 = math.tanh %22 : vector<16x128xf32>
    %cst_17 = arith.constant 1.000000e+00 : f32
    %27 = vector.broadcast %cst_17 : f32 to vector<16x128xf32>
    %28 = arith.mulf %27, %26 : vector<16x128xf32>
    %29 = arith.select %25, %28, %22 : vector<16x128xi1>, vector<16x128xf32>
    %30 = arith.truncf %29 : vector<16x128xf32> to vector<16x128xbf16>
    %c0_18 = arith.constant 0 : index
    %c0_19 = arith.constant 0 : index
    %31 = vector.load %arg8[%c0_18, %c0_19] : memref<16x128xbf16, #tpu.memory_space<vmem>>, vector<16x128xbf16>
    tpu.vector_store %arg8[%c0_18, %c0_19], %30 {strides = array<i32>} : memref<16x128xbf16, #tpu.memory_space<vmem>>, vector<16x128xbf16>,
    return
  }
  func.func @transform_0(%arg0: i32) -> (i32, i32) {
    %c0_i32 = arith.constant 0 : i32
    %c0_i32_0 = arith.constant 0 : i32
    return %arg0, %c0_i32 : i32, i32
  }
  func.func @transform_1(%arg0: i32) -> (i32, i32) {
    %c0_i32 = arith.constant 0 : i32
    %c0_i32_0 = arith.constant 0 : i32
    %c0_i32_1 = arith.constant 0 : i32
    return %c0_i32, %c0_i32_0 : i32, i32
  }
  func.func @transform_2(%arg0: i32) -> (i32, i32) {
    %c0_i32 = arith.constant 0 : i32
    %c0_i32_0 = arith.constant 0 : i32
    %c0_i32_1 = arith.constant 0 : i32
    return %c0_i32, %c0_i32_0 : i32, i32
  }
  func.func @transform_3(%arg0: i32) -> (i32, i32) {
    %c0_i32 = arith.constant 0 : i32
    %c0_i32_0 = arith.constant 0 : i32
    %c0_i32_1 = arith.constant 0 : i32
    return %c0_i32, %c0_i32_0 : i32, i32
  }
  func.func @transform_4(%arg0: i32) -> (i32, i32) {
    %c0_i32 = arith.constant 0 : i32
    %c0_i32_0 = arith.constant 0 : i32
    %c0_i32_1 = arith.constant 0 : i32
    return %c0_i32, %c0_i32_0 : i32, i32
  }
  func.func @transform_5(%arg0: i32) -> (i32, i32) {
    %c0_i32 = arith.constant 0 : i32
    %c0_i32_0 = arith.constant 0 : i32
    %c0_i32_1 = arith.constant 0 : i32
    return %c0_i32, %c0_i32_0 : i32, i32
  }
  func.func @transform_6(%arg0: i32) -> (i32, i32) {
    %c0_i32 = arith.constant 0 : i32
    %c0_i32_0 = arith.constant 0 : i32
    %c0_i32_1 = arith.constant 0 : i32
    return %c0_i32, %c0_i32_0 : i32, i32
  }
  func.func @transform_7(%arg0: i32) -> (i32, i32) {
    %c0_i32 = arith.constant 0 : i32
    %c0_i32_0 = arith.constant 0 : i32
    return %arg0, %c0_i32 : i32, i32
  }
}

</mosaic_0001>

<llo_original>
// kernel: tpu_custom_call.1
$region0: #{tpu_custom_call.1}
  #allocation0 [shape = 'u32[]', space=smem, size = 0x4, offset = 0x4, fixed_abs, tag = 'smem constant byte address 0x4 - core index']
  #allocation1 [shape = 'u32[144,128]{1,0:T(1,128)}', space=vmem, size = 0x12000, scoped, tag = 'internal scratch']
  %s0 = inlined_call_operand.hbm [shape: f32[16,16], index: 0, kind: input, shape index: {}]
  %s1 = inlined_call_operand.hbm [shape: bf16[16,128], index: 1, kind: input, shape index: {}]
  %s2 = inlined_call_operand.vmem [shape: f32[1,128], index: 2, kind: input, shape index: {}]
  %s3 = inlined_call_operand.hbm [shape: bf16[128,128], index: 3, kind: input, shape index: {}]
  %s4 = inlined_call_operand.vmem [shape: f32[1,128], index: 4, kind: input, shape index: {}]
  %s5 = inlined_call_operand.hbm [shape: bf16[128,128], index: 5, kind: input, shape index: {}]
  %s6 = inlined_call_operand.vmem [shape: f32[1,128], index: 6, kind: input, shape index: {}]
  %s7 = inlined_call_operand.hbm [shape: bf16[16,128], index: 7, kind: output, shape index: {}]
  %s8 = sld [smem:[#allocation0]]
  $region54: #{tpu_custom_call.1} parent=0
    _
  %s10 = ssub.s32 1, %s8
  %s11 = scalar_select 0, %s10, %s8
  $region1: #{tpu_custom_call.1} parent=0
    #allocation2 [shape = 'u8[8192]{0}', space=vmem, size = 0x2000, scoped, tag = 'input window, operand 0, single buffered']
    #allocation3 [shape = 's32[1]{0}', space=sflag, size = 0x4, scoped, tag = 'scoped memory for tpu_custom_call.1']
    #allocation4 [shape = 's32[1]{0}', space=sflag, size = 0x4, scoped, tag = 'scoped memory for tpu_custom_call.1']
    #allocation5 [shape = 'u8[4096]{0}', space=vmem, size = 0x1000, scoped, tag = 'input window, operand 1, single buffered']
    #allocation6 [shape = 's32[1]{0}', space=sflag, size = 0x4, scoped, tag = 'scoped memory for tpu_custom_call.1']
    #allocation7 [shape = 'u8[32768]{0}', space=vmem, size = 0x8000, scoped, tag = 'input window, operand 3, single buffered']
    #allocation8 [shape = 'u8[32768]{0}', space=vmem, size = 0x8000, scoped, tag = 'input window, operand 5, single buffered']
    #allocation9 [shape = 's32[1]{0}', space=sflag, size = 0x4, scoped, tag = 'scoped memory for tpu_custom_call.1']
    #allocation10 [shape = 'u8[4096]{0}', space=vmem, size = 0x1000, scoped, tag = 'output window, operand 0, single buffered']
    %12 = vsyncpa [#allocation3], 0
    %13 = vsyncpa [#allocation6], 0
    %14 = vsyncpa [#allocation9], 0
    %15 = vsyncpa [#allocation4], 0
    // Predicated region
    $region2: #{tpu_custom_call.1} parent=1 // pred_check
      _
    $region3: #{tpu_custom_call.1} parent=1 // pred_check_branch
      %17 = sbr.rel (0) target = $region5
    $region4: #{tpu_custom_call.1} parent=1 // pred_region
      %s19 = ssub.s32 256, 256
      %20 = vsyncadd [#allocation3], %s19
      %s21 = sshll.u32 [#allocation2], 4
      %s22 = int_to_ptr.vmem [resolvable:$true] %s21
      %27 = dma.hbm_to_vmem [thread:$0]  %s0, 256, %s22, [#allocation3], 128, 128, 8
    $region5: #{tpu_custom_call.1} parent=1 // pred_fallthru
      _
    // Predicated region
    $region6: #{tpu_custom_call.1} parent=1 // pred_check
      _
    $region7: #{tpu_custom_call.1} parent=1 // pred_check_branch
      %29 = sbr.rel (0) target = $region9
    $region8: #{tpu_custom_call.1} parent=1 // pred_region
      %s31 = ssub.s32 128, 128
      %32 = vsyncadd [#allocation6], %s31
      %s33 = sshll.u32 [#allocation5], 4
      %s34 = int_to_ptr.vmem [resolvable:$true] %s33
      %39 = dma.hbm_to_vmem [thread:$0]  %s1, 128, %s34, [#allocation6], 64, 64, 4
    $region9: #{tpu_custom_call.1} parent=1 // pred_fallthru
      _
    // Predicated region
    $region10: #{tpu_custom_call.1} parent=1 // pred_check
      _
    $region11: #{tpu_custom_call.1} parent=1 // pred_check_branch
      %41 = sbr.rel (0) target = $region13
    $region12: #{tpu_custom_call.1} parent=1 // pred_region
      _
    $region13: #{tpu_custom_call.1} parent=1 // pred_fallthru
      _
    // Predicated region
    $region14: #{tpu_custom_call.1} parent=1 // pred_check
      _
    $region15: #{tpu_custom_call.1} parent=1 // pred_check_branch
      %43 = sbr.rel (0) target = $region17
    $region16: #{tpu_custom_call.1} parent=1 // pred_region
      %s45 = ssub.s32 1024, 1024
      %46 = vsyncadd [#allocation6], %s45
      %s47 = sshll.u32 [#allocation7], 4
      %s48 = int_to_ptr.vmem [resolvable:$true] %s47
      %53 = dma.hbm_to_vmem [thread:$0]  %s3, 1024, %s48, [#allocation6], 64, 64, 4
    $region17: #{tpu_custom_call.1} parent=1 // pred_fallthru
      _
    // Predicated region
    $region18: #{tpu_custom_call.1} parent=1 // pred_check
      _
    $region19: #{tpu_custom_call.1} parent=1 // pred_check_branch
      %55 = sbr.rel (0) target = $region21
    $region20: #{tpu_custom_call.1} parent=1 // pred_region
      _
    $region21: #{tpu_custom_call.1} parent=1 // pred_fallthru
      _
    // Predicated region
    $region22: #{tpu_custom_call.1} parent=1 // pred_check
      _
    $region23: #{tpu_custom_call.1} parent=1 // pred_check_branch
      %57 = sbr.rel (0) target = $region25
    $region24: #{tpu_custom_call.1} parent=1 // pred_region
      %s59 = ssub.s32 1024, 1024
      %60 = vsyncadd [#allocation9], %s59
      %s61 = sshll.u32 [#allocation8], 4
      %s62 = int_to_ptr.vmem [resolvable:$true] %s61
      %67 = dma.hbm_to_vmem [thread:$0]  %s5, 1024, %s62, [#allocation9], 64, 64, 4
    $region25: #{tpu_custom_call.1} parent=1 // pred_fallthru
      _
    // Predicated region
    $region26: #{tpu_custom_call.1} parent=1 // pred_check
      _
    $region27: #{tpu_custom_call.1} parent=1 // pred_check_branch
      %69 = sbr.rel (0) target = $region29
    $region28: #{tpu_custom_call.1} parent=1 // pred_region
      _
    $region29: #{tpu_custom_call.1} parent=1 // pred_fallthru
      _
    // Predicated region
    $region30: #{tpu_custom_call.1} parent=1 // pred_check
      _
    $region31: #{tpu_custom_call.1} parent=1 // pred_check_branch
      %71 = sbr.rel (0) target = $region33
    $region32: #{tpu_custom_call.1} parent=1 // pred_region
      %72 = dma.done [#allocation3], 256
    $region33: #{tpu_custom_call.1} parent=1 // pred_fallthru
      _
    // Predicated region
    $region34: #{tpu_custom_call.1} parent=1 // pred_check
      _
    $region35: #{tpu_custom_call.1} parent=1 // pred_check_branch
      %74 = sbr.rel (0) target = $region37
    $region36: #{tpu_custom_call.1} parent=1 // pred_region
      %75 = dma.done [#allocation6], 128
    $region37: #{tpu_custom_call.1} parent=1 // pred_fallthru
      _
    // Predicated region
    $region38: #{tpu_custom_call.1} parent=1 // pred_check
      _
    $region39: #{tpu_custom_call.1} parent=1 // pred_check_branch
      %77 = sbr.rel (0) target = $region41
    $region40: #{tpu_custom_call.1} parent=1 // pred_region
      %78 = dma.done [#allocation6], 1024
    $region41: #{tpu_custom_call.1} parent=1 // pred_fallthru
      _
    // Predicated region
    $region42: #{tpu_custom_call.1} parent=1 // pred_check
      _
    $region43: #{tpu_custom_call.1} parent=1 // pred_check_branch
      %80 = sbr.rel (0) target = $region45
    $region44: #{tpu_custom_call.1} parent=1 // pred_region
      %81 = dma.done [#allocation9], 1024
    $region45: #{tpu_custom_call.1} parent=1 // pred_fallthru
      _
    %v83 = vld [vmem:[#allocation2] sm:$0xff]
    %v84 = vld [vmem:[#allocation2 + $0x8] sm:$0xff]
    %v85 = vpack.c.bf16 %v84, %v83
    %v86 = vld [vmem:[#allocation5] sm:$0xf]
    %v87 = vld [vmem:[#allocation5 + $0x4] sm:$0xf]
    %v88 = vld [vmem:[%s2] sm:$0x1]
    %v90 = vlaneseq
    %v91 = vshrl.u32 %v90, 7
    %v92 = vsub.s32 0, %v91
    %v93 = vrot.slane %v88, %v92
    %v97 = vunpack.c.l.b16 %v86
    %v98 = vunpack.c.l.b16 %v87
    %v99 = vpack.c.b16 %v98, %v97
    %vm101 = vcmask 130048
    %v103 = vsel %vm101, %v85, 0
    %105 = vmatprep.subr.bf16.mxu0 0
    %106 = vmatpush1.bf16.msra.mxu0 %v99
    %107 = vmatprep.subr.bf16.mxu0 0
    %108 = vmatpush1.bf16.msra.mxu0 0
    %109 = vmatprep.subr.bf16.mxu0 0
    %110 = vmatpush1.bf16.msra.mxu0 0
    %111 = vmatprep.subr.bf16.mxu0 0
    %112 = vmatpush1.bf16.msra.mxu0 0
    %113 = vmatprep.subr.bf16.mxu0 0
    %114 = vmatpush1.bf16.msra.mxu0 0
    %115 = vmatprep.subr.bf16.mxu0 0
    %116 = vmatpush1.bf16.msra.mxu0 0
    %117 = vmatprep.subr.bf16.mxu0 0
    %118 = vmatpush1.bf16.msra.mxu0 0
    %119 = vmatprep.subr.bf16.mxu0 0
    %120 = vmatpush1.bf16.msra.mxu0 0
    %121 = vmatprep.subr.bf16.mxu0 0
    %122 = vmatpush1.bf16.msra.mxu0 0
    %123 = vmatprep.subr.bf16.mxu0 0
    %124 = vmatpush1.bf16.msra.mxu0 0
    %125 = vmatprep.subr.bf16.mxu0 0
    %126 = vmatpush1.bf16.msra.mxu0 0
    %127 = vmatprep.subr.bf16.mxu0 0
    %128 = vmatpush1.bf16.msra.mxu0 0
    %129 = vmatprep.subr.bf16.mxu0 0
    %130 = vmatpush1.bf16.msra.mxu0 0
    %131 = vmatprep.subr.bf16.mxu0 0
    %132 = vmatpush1.bf16.msra.mxu0 0
    %133 = vmatprep.subr.bf16.mxu0 0
    %134 = vmatpush1.bf16.msra.mxu0 0
    %135 = vmatprep.subr.bf16.mxu0 0
    %136 = vmatpush1.bf16.msra.mxu0 0
    %137 = vmatprep.mubr.bf16.mxu0 0
    %138 = vmatmul.mubr.bf16.gmra.mrb[0].mxu0 %v103
    %v139 = vpop.f32.mrb[0].mxu0
    %v140 = vadd.f32 %v93, %v139
    %v141 = vpop.f32.mrb[0].mxu0
    %v142 = vpop.f32.mrb[0].mxu0
    %v143 = vadd.f32 %v93, %v142
    %v144 = vpop.f32.mrb[0].mxu0
    %145 = vdwg.mxu0
    %v146 = vmax.f32 %v140, 0.0
    %v147 = vmax.f32 %v143, 0.0
    %v148 = vpack.c.bf16 %v147, %v146
    %v149 = vld [vmem:[#allocation7] sm:$0xf]
    %v150 = vld [vmem:[#allocation7 + $0x4] sm:$0xf]
    %v151 = vld [vmem:[#allocation7 + $0x8] sm:$0xf]
    %v152 = vld [vmem:[#allocation7 + $0xc] sm:$0xf]
    %v153 = vld [vmem:[#allocation7 + $0x10] sm:$0xf]
    %v154 = vld [vmem:[#allocation7 + $0x14] sm:$0xf]
    %v155 = vld [vmem:[#allocation7 + $0x18] sm:$0xf]
    %v156 = vld [vmem:[#allocation7 + $0x1c] sm:$0xf]
    %v157 = vld [vmem:[#allocation7 + $0x20] sm:$0xf]
    %v158 = vld [vmem:[#allocation7 + $0x24] sm:$0xf]
    %v159 = vld [vmem:[#allocation7 + $0x28] sm:$0xf]
    %v160 = vld [vmem:[#allocation7 + $0x2c] sm:$0xf]
    %v161 = vld [vmem:[#allocation7 + $0x30] sm:$0xf]
    %v162 = vld [vmem:[#allocation7 + $0x34] sm:$0xf]
    %v163 = vld [vmem:[#allocation7 + $0x38] sm:$0xf]
    %v164 = vld [vmem:[#allocation7 + $0x3c] sm:$0xf]
    %v165 = vld [vmem:[%s4] sm:$0x1]
    %v167 = vlaneseq
    %v168 = vshrl.u32 %v167, 7
    %v169 = vsub.s32 0, %v168
    %v170 = vrot.slane %v165, %v169
    %v188 = vunpack.c.l.b16 %v149
    %v189 = vunpack.c.l.b16 %v150
    %v190 = vunpack.c.l.b16 %v151
    %v191 = vunpack.c.l.b16 %v152
    %v192 = vunpack.c.l.b16 %v153
    %v193 = vunpack.c.l.b16 %v154
    %v194 = vunpack.c.l.b16 %v155
    %v195 = vunpack.c.l.b16 %v156
    %v196 = vunpack.c.l.b16 %v157
    %v197 = vunpack.c.l.b16 %v158
    %v198 = vunpack.c.l.b16 %v159
    %v199 = vunpack.c.l.b16 %v160
    %v200 = vunpack.c.l.b16 %v161
    %v201 = vunpack.c.l.b16 %v162
    %v202 = vunpack.c.l.b16 %v163
    %v203 = vunpack.c.l.b16 %v164
    %v204 = vpack.c.b16 %v189, %v188
    %v205 = vpack.c.b16 %v191, %v190
    %v206 = vpack.c.b16 %v193, %v192
    %v207 = vpack.c.b16 %v195, %v194
    %v208 = vpack.c.b16 %v197, %v196
    %v209 = vpack.c.b16 %v199, %v198
    %v210 = vpack.c.b16 %v201, %v200
    %v211 = vpack.c.b16 %v203, %v202
    %220 = vmatprep.subr.bf16.mxu0 0
    %221 = vmatpush1.bf16.msra.mxu0 %v204
    %222 = vmatprep.subr.bf16.mxu0 0
    %223 = vmatpush1.bf16.msra.mxu0 %v205
    %224 = vmatprep.subr.bf16.mxu0 0
    %225 = vmatpush1.bf16.msra.mxu0 %v206
    %226 = vmatprep.subr.bf16.mxu0 0
    %227 = vmatpush1.bf16.msra.mxu0 %v207
    %228 = vmatprep.subr.bf16.mxu0 0
    %229 = vmatpush1.bf16.msra.mxu0 %v208
    %230 = vmatprep.subr.bf16.mxu0 0
    %231 = vmatpush1.bf16.msra.mxu0 %v209
    %232 = vmatprep.subr.bf16.mxu0 0
    %233 = vmatpush1.bf16.msra.mxu0 %v210
    %234 = vmatprep.subr.bf16.mxu0 0
    %235 = vmatpush1.bf16.msra.mxu0 %v211
    %236 = vmatprep.subr.bf16.mxu0 0
    %237 = vmatpush1.bf16.msra.mxu0 0
    %238 = vmatprep.subr.bf16.mxu0 0
    %239 = vmatpush1.bf16.msra.mxu0 0
    %240 = vmatprep.subr.bf16.mxu0 0
    %241 = vmatpush1.bf16.msra.mxu0 0
    %242 = vmatprep.subr.bf16.mxu0 0
    %243 = vmatpush1.bf16.msra.mxu0 0
    %244 = vmatprep.subr.bf16.mxu0 0
    %245 = vmatpush1.bf16.msra.mxu0 0
    %246 = vmatprep.subr.bf16.mxu0 0
    %247 = vmatpush1.bf16.msra.mxu0 0
    %248 = vmatprep.subr.bf16.mxu0 0
    %249 = vmatpush1.bf16.msra.mxu0 0
    %250 = vmatprep.subr.bf16.mxu0 0
    %251 = vmatpush1.bf16.msra.mxu0 0
    %252 = vmatprep.mubr.bf16.mxu0 0
    %253 = vmatmul.mubr.bf16.gmra.mrb[0].mxu0 %v148
    %v254 = vpop.f32.mrb[0].mxu0
    %v255 = vadd.f32 %v170, %v254
    %v256 = vpop.f32.mrb[0].mxu0
    %v257 = vpop.f32.mrb[0].mxu0
    %v258 = vadd.f32 %v170, %v257
    %v259 = vpop.f32.mrb[0].mxu0
    %260 = vdwg.mxu0
    %v261 = vmax.f32 %v255, 0.0
    %v262 = vmax.f32 %v258, 0.0
    %v263 = vpack.c.bf16 %v262, %v261
    %v264 = vld [vmem:[#allocation8] sm:$0xf]
    %v265 = vld [vmem:[#allocation8 + $0x4] sm:$0xf]
    %v266 = vld [vmem:[#allocation8 + $0x8] sm:$0xf]
    %v267 = vld [vmem:[#allocation8 + $0xc] sm:$0xf]
    %v268 = vld [vmem:[#allocation8 + $0x10] sm:$0xf]
    %v269 = vld [vmem:[#allocation8 + $0x14] sm:$0xf]
    %v270 = vld [vmem:[#allocation8 + $0x18] sm:$0xf]
    %v271 = vld [vmem:[#allocation8 + $0x1c] sm:$0xf]
    %v272 = vld [vmem:[#allocation8 + $0x20] sm:$0xf]
    %v273 = vld [vmem:[#allocation8 + $0x24] sm:$0xf]
    %v274 = vld [vmem:[#allocation8 + $0x28] sm:$0xf]
    %v275 = vld [vmem:[#allocation8 + $0x2c] sm:$0xf]
    %v276 = vld [vmem:[#allocation8 + $0x30] sm:$0xf]
    %v277 = vld [vmem:[#allocation8 + $0x34] sm:$0xf]
    %v278 = vld [vmem:[#allocation8 + $0x38] sm:$0xf]
    %v279 = vld [vmem:[#allocation8 + $0x3c] sm:$0xf]
    %v280 = vld [vmem:[%s6] sm:$0x1]
    %v282 = vlaneseq
    %v283 = vshrl.u32 %v282, 7
    %v284 = vsub.s32 0, %v283
    %v285 = vrot.slane %v280, %v284
    %v303 = vunpack.c.l.b16 %v264
    %v304 = vunpack.c.l.b16 %v265
    %v305 = vunpack.c.l.b16 %v266
    %v306 = vunpack.c.l.b16 %v267
    %v307 = vunpack.c.l.b16 %v268
    %v308 = vunpack.c.l.b16 %v269
    %v309 = vunpack.c.l.b16 %v270
    %v310 = vunpack.c.l.b16 %v271
    %v311 = vunpack.c.l.b16 %v272
    %v312 = vunpack.c.l.b16 %v273
    %v313 = vunpack.c.l.b16 %v274
    %v314 = vunpack.c.l.b16 %v275
    %v315 = vunpack.c.l.b16 %v276
    %v316 = vunpack.c.l.b16 %v277
    %v317 = vunpack.c.l.b16 %v278
    %v318 = vunpack.c.l.b16 %v279
    %v319 = vpack.c.b16 %v304, %v303
    %v320 = vpack.c.b16 %v306, %v305
    %v321 = vpack.c.b16 %v308, %v307
    %v322 = vpack.c.b16 %v310, %v309
    %v323 = vpack.c.b16 %v312, %v311
    %v324 = vpack.c.b16 %v314, %v313
    %v325 = vpack.c.b16 %v316, %v315
    %v326 = vpack.c.b16 %v318, %v317
    %335 = vmatprep.subr.bf16.mxu0 0
    %336 = vmatpush1.bf16.msra.mxu0 %v319
    %337 = vmatprep.subr.bf16.mxu0 0
    %338 = vmatpush1.bf16.msra.mxu0 %v320
    %339 = vmatprep.subr.bf16.mxu0 0
    %340 = vmatpush1.bf16.msra.mxu0 %v321
    %341 = vmatprep.subr.bf16.mxu0 0
    %342 = vmatpush1.bf16.msra.mxu0 %v322
    %343 = vmatprep.subr.bf16.mxu0 0
    %344 = vmatpush1.bf16.msra.mxu0 %v323
    %345 = vmatprep.subr.bf16.mxu0 0
    %346 = vmatpush1.bf16.msra.mxu0 %v324
    %347 = vmatprep.subr.bf16.mxu0 0
    %348 = vmatpush1.bf16.msra.mxu0 %v325
    %349 = vmatprep.subr.bf16.mxu0 0
    %350 = vmatpush1.bf16.msra.mxu0 %v326
    %351 = vmatprep.subr.bf16.mxu0 0
    %352 = vmatpush1.bf16.msra.mxu0 0
    %353 = vmatprep.subr.bf16.mxu0 0
    %354 = vmatpush1.bf16.msra.mxu0 0
    %355 = vmatprep.subr.bf16.mxu0 0
    %356 = vmatpush1.bf16.msra.mxu0 0
    %357 = vmatprep.subr.bf16.mxu0 0
    %358 = vmatpush1.bf16.msra.mxu0 0
    %359 = vmatprep.subr.bf16.mxu0 0
    %360 = vmatpush1.bf16.msra.mxu0 0
    %361 = vmatprep.subr.bf16.mxu0 0
    %362 = vmatpush1.bf16.msra.mxu0 0
    %363 = vmatprep.subr.bf16.mxu0 0
    %364 = vmatpush1.bf16.msra.mxu0 0
    %365 = vmatprep.subr.bf16.mxu0 0
    %366 = vmatpush1.bf16.msra.mxu0 0
    %367 = vmatprep.mubr.bf16.mxu0 0
    %368 = vmatmul.mubr.bf16.gmra.mrb[0].mxu0 %v263
    %v369 = vpop.f32.mrb[0].mxu0
    %v370 = vadd.f32 %v285, %v369
    %v371 = vpop.f32.mrb[0].mxu0
    %v372 = vpop.f32.mrb[0].mxu0
    %v373 = vadd.f32 %v285, %v372
    %v374 = vpop.f32.mrb[0].mxu0
    %375 = vdwg.mxu0
    %v376 = vlaneseq
    %v377 = vand.u32 %v376, 127
    %vm378 = vcmp.lt.s32.totalorder %v377, 2
    %v379 = vtanh.pop %v370
    %v380 = vtanh.pop %v373
    %v381 = vsel %vm378, %v379, %v370
    %v382 = vsel %vm378, %v380, %v373
    %v383 = vpack.c.bf16 %v382, %v381
    %v385 = vunpack.c.l.b16 %v383
    %v386 = vunpack.c.h.b16 %v383
    %v387 = vpack.c.b16 %v385, %v385
    %v388 = vpack.c.b16 %v386, %v386
    %391 = vst [vmem:[#allocation10] sm:$0xf] %v387
    %392 = vst [vmem:[#allocation10 + $0x4] sm:$0xf] %v388
    // Predicated region
    $region46: #{tpu_custom_call.1} parent=1 // pred_check
      _
    $region47: #{tpu_custom_call.1} parent=1 // pred_check_branch
      %394 = sbr.rel (0) target = $region49
    $region48: #{tpu_custom_call.1} parent=1 // pred_region
      %s396 = ssub.s32 128, 128
      %397 = vsyncadd [#allocation4], %s396
      %s398 = sshll.u32 [#allocation10], 4
      %s399 = int_to_ptr.vmem [resolvable:$true] %s398
      %404 = dma.vmem_to_hbm [thread:$0]  %s399, 128, %s7, [#allocation4], 64, 64, 4
    $region49: #{tpu_custom_call.1} parent=1 // pred_fallthru
      _
    // Predicated region
    $region50: #{tpu_custom_call.1} parent=1 // pred_check
      _
    $region51: #{tpu_custom_call.1} parent=1 // pred_check_branch
      %406 = sbr.rel (0) target = $region53
    $region52: #{tpu_custom_call.1} parent=1 // pred_region
      %407 = dma.done [#allocation4], 128
    $region53: #{tpu_custom_call.1} parent=1 // pred_fallthru
      _
    %408 = vsyncpa [#allocation3], 1
    %409 = vsyncpa [#allocation6], 1
    %410 = vsyncpa [#allocation9], 1
    %411 = vsyncpa [#allocation4], 1

</llo_original>
